<compile_context>
chip_gen: v7x
topology: tpu7x:2x2x1
jax: 0.10.0
libtpu: 0.0.40
codegen_flags: <defaults>
</compile_context>

<pallas_src>
import functools

import jax
import jax.numpy as jnp
from jax.experimental import pallas as pl
from jax.experimental.pallas import tpu as pltpu


def _round_up(n, m):
    return ((n + m - 1) // m) * m


def _xnor_kernel(p_ref, x_ref, o_ref):
    # p_ref : SMEM f32[9]  -- host-folded constants (sigmoid 0.5-scales baked in):
    #   [0.5*w1_00, 0.5*w1_01, 0.5*w1_10, 0.5*w1_11, 0.5*b1_0, 0.5*b1_1,
    #    0.25*w2_00, 0.25*w2_01, 0.25*(w2_00 + w2_01) + 0.5*b2_0]
    # x_ref : VMEM f32[2, rt, 128]  (feature planes; batch on sublanes x lanes)
    # o_ref : VMEM f32[rt, 128]
    x0 = x_ref[0]                                    # [rt, 128]
    x1 = x_ref[1]                                    # [rt, 128]

    # sigmoid(z) = 0.5*tanh(0.5*z) + 0.5 ; the 0.5 pre-scales are in p_ref.
    t0 = jnp.tanh(p_ref[0] * x0 + p_ref[1] * x1 + p_ref[4])    # = 2*h0 - 1
    t1 = jnp.tanh(p_ref[2] * x0 + p_ref[3] * x1 + p_ref[5])    # = 2*h1 - 1

    # output layer folded through the tanh identity; dense full-vreg store.
    o_ref[...] = 0.5 * jnp.tanh(p_ref[6] * t0 + p_ref[7] * t1 + p_ref[8]) + 0.5


@functools.partial(jax.jit, static_argnames=("row_tile",))
def xnor_net_forward(x, w1, b1, w2, b2, *, row_tile=1024):
    """x: [B, 2] f32; w1: [2, 2]; b1: [2]; w2: [1, 2]; b2: [1] (PyTorch layout)."""
    B = x.shape[0]

    # ---- tiling: batch laid out as [2, rows, 128] (sublane- and lane-dense) ----
    R = _round_up(B, 128) // 128            # rows of 128 lanes needed for B
    rt = max(8, _round_up(row_tile, 8))     # sublane-dense row tile (multiple of 8)
    if R > 8:
        # keep >= 2 grid steps so dimension_semantics="parallel" can shard
        # across both v7x TensorCores (no-op on v5e/v6e).
        rt = min(rt, _round_up(pl.cdiv(R, 2), 8))
    rt = min(rt, _round_up(R, 8))
    R_pad = _round_up(R, rt)
    B_pad = R_pad * 128
    grid = (R_pad // rt,)

    # ---- host layout: one fused transpose+pad pass, then a free reshape ----
    x_t = jnp.pad(x.astype(jnp.float32).T, ((0, 0), (0, B_pad - B)))
    x_t = x_t.reshape(2, R_pad, 128)

    # ---- fold sigmoid(z) = 0.5*tanh(0.5*z)+0.5 scales + layer-2 affine into 9
    #      SMEM scalars (one tiny transfer, scalars read from SMEM in-kernel) ----
    w1f = w1.astype(jnp.float32).reshape(-1)        # [w00, w01, w10, w11]
    b1f = b1.astype(jnp.float32).reshape(-1)
    w2f = w2.astype(jnp.float32).reshape(-1)        # [v0, v1]
    b2f = b2.astype(jnp.float32).reshape(-1)
    params = jnp.concatenate([
        0.5 * w1f,
        0.5 * b1f,
        0.25 * w2f,
        0.25 * jnp.sum(w2f)[None] + 0.5 * b2f,
    ])

    out = pl.pallas_call(
        _xnor_kernel,
        out_shape=jax.ShapeDtypeStruct((R_pad, 128), jnp.float32),
        grid=grid,
        in_specs=[
            pl.BlockSpec(memory_space=pltpu.MemorySpace.SMEM),   # params, untiled
            pl.BlockSpec((2, rt, 128), lambda i: (0, i, 0)),     # x tile
        ],
        out_specs=pl.BlockSpec((rt, 128), lambda i: (i, 0)),
        compiler_params=pltpu.CompilerParams(
            dimension_semantics=("parallel",),                   # megacore on v7x
        ),
    )(params, x_t)

    # Back to the PyTorch output shape [B, 1].
    return out.reshape(-1)[:B].reshape(B, 1)


def xnor_net_reference(x, w1, b1, w2, b2):
    h = jax.nn.sigmoid(x @ w1.T + b1)
    return jax.nn.sigmoid(h @ w2.T + b2)


if __name__ == "__main__":
    key = jax.random.PRNGKey(0)
    kx, k1, k2, k3, k4, kx2 = jax.random.split(key, 6)

    # Deterministic PyTorch-style uniform(-1/sqrt(fan_in), 1/sqrt(fan_in)) init.
    bound = 1.0 / jnp.sqrt(2.0)
    w1 = jax.random.uniform(k1, (2, 2), jnp.float32, -bound, bound)   # [out, in]
    b1 = jax.random.uniform(k2, (2,), jnp.float32, -bound, bound)
    w2 = jax.random.uniform(k3, (1, 2), jnp.float32, -bound, bound)   # [out, in]
    b2 = jax.random.uniform(k4, (1,), jnp.float32, -bound, bound)

    # Small canonical batch (XNOR toy problem scale).
    B = 8
    x = jax.random.normal(kx, (B, 2), dtype=jnp.float32)
    out = jax.block_until_ready(xnor_net_forward(x, w1, b1, w2, b2))
    ref = xnor_net_reference(x, w1, b1, w2, b2)
    assert out.shape == (B, 1), out.shape
    assert jnp.allclose(out, ref, atol=1e-5, rtol=1e-5), (out, ref)

    # Larger batch exercising padding and a multi-step "parallel" grid.
    B2 = 2500
    x2 = jax.random.normal(kx2, (B2, 2), dtype=jnp.float32)
    out2 = jax.block_until_ready(xnor_net_forward(x2, w1, b1, w2, b2))
    ref2 = xnor_net_reference(x2, w1, b1, w2, b2)
    assert out2.shape == (B2, 1), out2.shape
    assert jnp.allclose(out2, ref2, atol=1e-5, rtol=1e-5)

    print("KERNEL_OK")
</pallas_src>

<mosaic_0001>
module attributes {stable_mosaic.version = 11 : i64} {
  func.func @_xnor_kernel(%arg0: i32, %arg1: memref<9xf32, #tpu.memory_space<smem>>, %arg2: memref<2x8x128xf32, #tpu.memory_space<vmem>>, %arg3: memref<8x128xf32, #tpu.memory_space<vmem>>) attributes {dimension_semantics = [#tpu.dimension_semantics<parallel>], iteration_bounds = array<i64: 1>, scalar_prefetch = 0 : i64, scratch_operands = 0 : i64, tpu.core_type = #tpu.core_type<tc>, window_params = [{transform_indices = @transform_0, window_bounds = array<i64: 9>}, {transform_indices = @transform_1, window_bounds = array<i64: 2, 8, 128>}, {transform_indices = @transform_2, window_bounds = array<i64: 8, 128>}]} {
    %c0 = arith.constant 0 : index
    %c0_0 = arith.constant 0 : index
    %c0_1 = arith.constant 0 : index
    %0 = vector.load %arg2[%c0, %c0_0, %c0_1] : memref<2x8x128xf32, #tpu.memory_space<vmem>>, vector<1x8x128xf32>
    %1 = vector.shape_cast %0 : vector<1x8x128xf32> to vector<8x128xf32>
    %c1 = arith.constant 1 : index
    %c0_2 = arith.constant 0 : index
    %c0_3 = arith.constant 0 : index
    %2 = vector.load %arg2[%c1, %c0_2, %c0_3] : memref<2x8x128xf32, #tpu.memory_space<vmem>>, vector<1x8x128xf32>
    %3 = vector.shape_cast %2 : vector<1x8x128xf32> to vector<8x128xf32>
    %c0_4 = arith.constant 0 : index
    %4 = memref.load %arg1[%c0_4] : memref<9xf32, #tpu.memory_space<smem>>
    %5 = vector.broadcast %4 : f32 to vector<8x128xf32>
    %6 = arith.mulf %5, %1 : vector<8x128xf32>
    %c1_5 = arith.constant 1 : index
    %7 = memref.load %arg1[%c1_5] : memref<9xf32, #tpu.memory_space<smem>>
    %8 = vector.broadcast %7 : f32 to vector<8x128xf32>
    %9 = arith.mulf %8, %3 : vector<8x128xf32>
    %10 = arith.addf %6, %9 : vector<8x128xf32>
    %c4 = arith.constant 4 : index
    %11 = memref.load %arg1[%c4] : memref<9xf32, #tpu.memory_space<smem>>
    %12 = vector.broadcast %11 : f32 to vector<8x128xf32>
    %13 = arith.addf %10, %12 : vector<8x128xf32>
    %14 = math.tanh %13 : vector<8x128xf32>
    %c2 = arith.constant 2 : index
    %15 = memref.load %arg1[%c2] : memref<9xf32, #tpu.memory_space<smem>>
    %16 = vector.broadcast %15 : f32 to vector<8x128xf32>
    %17 = arith.mulf %16, %1 : vector<8x128xf32>
    %c3 = arith.constant 3 : index
    %18 = memref.load %arg1[%c3] : memref<9xf32, #tpu.memory_space<smem>>
    %19 = vector.broadcast %18 : f32 to vector<8x128xf32>
    %20 = arith.mulf %19, %3 : vector<8x128xf32>
    %21 = arith.addf %17, %20 : vector<8x128xf32>
    %c5 = arith.constant 5 : index
    %22 = memref.load %arg1[%c5] : memref<9xf32, #tpu.memory_space<smem>>
    %23 = vector.broadcast %22 : f32 to vector<8x128xf32>
    %24 = arith.addf %21, %23 : vector<8x128xf32>
    %25 = math.tanh %24 : vector<8x128xf32>
    %c6 = arith.constant 6 : index
    %26 = memref.load %arg1[%c6] : memref<9xf32, #tpu.memory_space<smem>>
    %27 = vector.broadcast %26 : f32 to vector<8x128xf32>
    %28 = arith.mulf %27, %14 : vector<8x128xf32>
    %c7 = arith.constant 7 : index
    %29 = memref.load %arg1[%c7] : memref<9xf32, #tpu.memory_space<smem>>
    %30 = vector.broadcast %29 : f32 to vector<8x128xf32>
    %31 = arith.mulf %30, %25 : vector<8x128xf32>
    %32 = arith.addf %28, %31 : vector<8x128xf32>
    %c8 = arith.constant 8 : index
    %33 = memref.load %arg1[%c8] : memref<9xf32, #tpu.memory_space<smem>>
    %34 = vector.broadcast %33 : f32 to vector<8x128xf32>
    %35 = arith.addf %32, %34 : vector<8x128xf32>
    %36 = math.tanh %35 : vector<8x128xf32>
    %cst = arith.constant 5.000000e-01 : f32
    %37 = vector.broadcast %cst : f32 to vector<8x128xf32>
    %38 = arith.mulf %37, %36 : vector<8x128xf32>
    %cst_6 = arith.constant 5.000000e-01 : f32
    %39 = vector.broadcast %cst_6 : f32 to vector<8x128xf32>
    %40 = arith.addf %38, %39 : vector<8x128xf32>
    %c0_7 = arith.constant 0 : index
    %c0_8 = arith.constant 0 : index
    %41 = vector.load %arg3[%c0_7, %c0_8] : memref<8x128xf32, #tpu.memory_space<vmem>>, vector<8x128xf32>
    tpu.vector_store %arg3[%c0_7, %c0_8], %40 {strides = array<i32>} : memref<8x128xf32, #tpu.memory_space<vmem>>, vector<8x128xf32>,
    return
  }
  func.func @transform_0(%arg0: i32) -> i32 {
    %c0_i32 = arith.constant 0 : i32
    %c0_i32_0 = arith.constant 0 : i32
    return %c0_i32 : i32
  }
  func.func @transform_1(%arg0: i32) -> (i32, i32, i32) {
    %c0_i32 = arith.constant 0 : i32
    %c0_i32_0 = arith.constant 0 : i32
    %c0_i32_1 = arith.constant 0 : i32
    return %c0_i32, %arg0, %c0_i32_0 : i32, i32, i32
  }
  func.func @transform_2(%arg0: i32) -> (i32, i32) {
    %c0_i32 = arith.constant 0 : i32
    %c0_i32_0 = arith.constant 0 : i32
    return %arg0, %c0_i32 : i32, i32
  }
}

</mosaic_0001>

<llo_original>
// kernel: xnor_net_forward.1
$region0: #{xnor_net_forward.1}
  #allocation0 [shape = 'u32[]', space=smem, size = 0x4, offset = 0x4, fixed_abs, tag = 'smem constant byte address 0x4 - core index']
  #allocation1 [shape = 'u32[144,128]{1,0:T(1,128)}', space=vmem, size = 0x12000, scoped, tag = 'internal scratch']
  %s0 = inlined_call_operand.vmem [shape: f32[9], index: 0, kind: input, shape index: {}]
  %s1 = inlined_call_operand.vmem [shape: f32[2,8,128], index: 1, kind: input, shape index: {}]
  %s2 = inlined_call_operand.vmem [shape: f32[8,128], index: 2, kind: output, shape index: {}]
  %s3 = sld [smem:[#allocation0]]
  $region22: #{xnor_net_forward.1} parent=0
    _
  %s5 = ssub.s32 1, %s3
  %s6 = scalar_select 0, %s5, %s3
  $region1: #{xnor_net_forward.1} parent=0
    #allocation2 [shape = 'u8[512]{0}', space=smem, size = 0x200, scoped, tag = 'input window, operand 0, single buffered']
    #allocation3 [shape = 's32[1]{0}', space=sflag, size = 0x4, scoped, tag = 'scoped memory for xnor_net_forward.1']
    %7 = vsyncpa [#allocation3], 0
    // Predicated region
    $region2: #{xnor_net_forward.1} parent=1 // pred_check
      _
    $region3: #{xnor_net_forward.1} parent=1 // pred_check_branch
      %9 = sbr.rel (0) target = $region5
    $region4: #{xnor_net_forward.1} parent=1 // pred_region
      %s11 = ssub.s32 16, 16
      %12 = vsyncadd [#allocation3], %s11
      %s14 = sshll.u32 %s0, 4
      %s15 = int_to_ptr.vmem [resolvable:$true] %s14
      %17 = dma.vmem_to_smem %s15, 16, [#allocation2], [#allocation3]
    $region5: #{xnor_net_forward.1} parent=1 // pred_fallthru
      _
    // Predicated region
    $region6: #{xnor_net_forward.1} parent=1 // pred_check
      _
    $region7: #{xnor_net_forward.1} parent=1 // pred_check_branch
      %19 = sbr.rel (0) target = $region9
    $region8: #{xnor_net_forward.1} parent=1 // pred_region
      _
    $region9: #{xnor_net_forward.1} parent=1 // pred_fallthru
      _
    // Predicated region
    $region10: #{xnor_net_forward.1} parent=1 // pred_check
      _
    $region11: #{xnor_net_forward.1} parent=1 // pred_check_branch
      %21 = sbr.rel (0) target = $region13
    $region12: #{xnor_net_forward.1} parent=1 // pred_region
      %22 = dma.done [#allocation3], 16
    $region13: #{xnor_net_forward.1} parent=1 // pred_fallthru
      _
    %23 = sfence
    %v24 = vld [vmem:[%s1] sm:$0xff]
    %s25 = scalar_lea.vmem %s1, 8
    %v26 = vld [vmem:[%s25] sm:$0xff]
    %s27 = sld [smem:[#allocation2]]
    %v28 = vstv %s27
    %v29 = vmul.f32 %v28, %v24
    %s30 = sld [smem:[#allocation2 + $0x1]]
    %v31 = vstv %s30
    %v32 = vmul.f32 %v31, %v26
    %v33 = vadd.f32 %v29, %v32
    %s34 = sld [smem:[#allocation2 + $0x4]]
    %v35 = vstv %s34
    %v36 = vadd.f32 %v33, %v35
    %v37 = vtanh.pop %v36
    %s38 = sld [smem:[#allocation2 + $0x2]]
    %v39 = vstv %s38
    %v40 = vmul.f32 %v39, %v24
    %s41 = sld [smem:[#allocation2 + $0x3]]
    %v42 = vstv %s41
    %v43 = vmul.f32 %v42, %v26
    %v44 = vadd.f32 %v40, %v43
    %s45 = sld [smem:[#allocation2 + $0x5]]
    %v46 = vstv %s45
    %v47 = vadd.f32 %v44, %v46
    %v48 = vtanh.pop %v47
    %s49 = sld [smem:[#allocation2 + $0x6]]
    %v50 = vstv %s49
    %v51 = vmul.f32 %v50, %v37
    %s52 = sld [smem:[#allocation2 + $0x7]]
    %v53 = vstv %s52
    %v54 = vmul.f32 %v53, %v48
    %v55 = vadd.f32 %v51, %v54
    %s56 = sld [smem:[#allocation2 + $0x8]]
    %v57 = vstv %s56
    %v58 = vadd.f32 %v55, %v57
    %v59 = vtanh.pop %v58
    %v60 = vmul.f32 %v59, 0.5
    %v61 = vadd.f32 %v60, 0.5
    %62 = vst [vmem:[%s2] sm:$0xff] %v61
    // Predicated region
    $region14: #{xnor_net_forward.1} parent=1 // pred_check
      _
    $region15: #{xnor_net_forward.1} parent=1 // pred_check_branch
      %64 = sbr.rel (0) target = $region17
    $region16: #{xnor_net_forward.1} parent=1 // pred_region
      _
    $region17: #{xnor_net_forward.1} parent=1 // pred_fallthru
      _
    // Predicated region
    $region18: #{xnor_net_forward.1} parent=1 // pred_check
      _
    $region19: #{xnor_net_forward.1} parent=1 // pred_check_branch
      %66 = sbr.rel (0) target = $region21
    $region20: #{xnor_net_forward.1} parent=1 // pred_region
      _
    $region21: #{xnor_net_forward.1} parent=1 // pred_fallthru
      _
    %67 = vsyncpa [#allocation3], 1

</llo_original>
